<compile_context>
chip_gen: v7x
topology: tpu7x:2x2x1
jax: 0.10.0
libtpu: 0.0.40
codegen_flags: <defaults>
</compile_context>

<pallas_src>
import jax
import jax.numpy as jnp
from jax.experimental import pallas as pl
from jax.experimental.pallas import tpu as pltpu


def gcn_kernel(a_ref, x_ref, w1_ref, b1_ref, w2_ref, b2_ref, out_ref):
    """Whole-graph GCN forward, all operands VMEM-resident (small graphs).

    a/x/w refs are bf16; biases and the output are f32. All matmuls accumulate
    in f32 via preferred_element_type; MXU inputs are kept bf16.
    """
    a = a_ref[...]                                                       # [Np, Np] bf16

    # ---- Layer 1: GraphConv(in_size, hid_size, activation=relu) ----
    xw1 = jnp.dot(x_ref[...], w1_ref[...],
                  preferred_element_type=jnp.float32)                    # [Np, Hp] f32
    h1 = jnp.dot(a, xw1.astype(jnp.bfloat16),
                 preferred_element_type=jnp.float32) + b1_ref[...]       # [Np, Hp] f32
    h1 = jnp.maximum(h1, 0.0)                                            # relu

    # TODO(synk): nn.Dropout(0.5) between layers is stochastic in train mode;
    # implemented here as identity (eval-mode semantics).

    # ---- Layer 2: GraphConv(hid_size, out_size) ----
    hw2 = jnp.dot(h1.astype(jnp.bfloat16), w2_ref[...],
                  preferred_element_type=jnp.float32)                    # [Np, Op] f32
    h2 = jnp.dot(a, hw2.astype(jnp.bfloat16),
                 preferred_element_type=jnp.float32) + b2_ref[...]       # [Np, Op] f32

    out_ref[...] = h2                                                    # lane-dense store


def _round_up(v, m):
    return ((v + m - 1) // m) * m


def _pad_to(x, shape):
    return jnp.pad(x, [(0, s - d) for d, s in zip(x.shape, shape)])


def gcn_forward(a_hat, x, w1, b1, w2, b2):
    """Pallas wrapper: zero-pad to lane-dense (128-multiple) shapes, cast the heavy
    operands to bf16, run one no-grid VMEM-resident kernel, slice the valid block."""
    n, in_size = x.shape
    hid_size = w1.shape[1]
    out_size = w2.shape[1]

    n_p = _round_up(n, 128)        # node dim: rows (sublane) and A_hat lanes
    in_p = _round_up(in_size, 128)
    hid_p = _round_up(hid_size, 128)
    out_p = _round_up(out_size, 128)

    # Zero-padding preserves the valid block exactly (padded rows/cols of A_hat, X,
    # W are zero; padded rows of the output only carry broadcast bias and are sliced).
    a_p = _pad_to(a_hat, (n_p, n_p)).astype(jnp.bfloat16)
    x_p = _pad_to(x, (n_p, in_p)).astype(jnp.bfloat16)
    w1_p = _pad_to(w1, (in_p, hid_p)).astype(jnp.bfloat16)
    w2_p = _pad_to(w2, (hid_p, out_p)).astype(jnp.bfloat16)
    b1_p = _pad_to(b1.reshape(1, -1), (1, hid_p)).astype(jnp.float32)
    b2_p = _pad_to(b2.reshape(1, -1), (1, out_p)).astype(jnp.float32)

    vmem = lambda: pl.BlockSpec(memory_space=pltpu.MemorySpace.VMEM)

    out_p_arr = pl.pallas_call(
        gcn_kernel,
        out_shape=jax.ShapeDtypeStruct((n_p, out_p), jnp.float32),
        in_specs=[vmem() for _ in range(6)],
        out_specs=vmem(),
        compiler_params=pltpu.CompilerParams(
            # Raise the default scoped VMEM limit so mid-size graphs fit; actual
            # usage at these shapes is only a few hundred KiB.
            vmem_limit_bytes=64 * 1024 * 1024),
    )(a_p, x_p, w1_p, b1_p, w2_p, b2_p)

    return out_p_arr[:n, :out_size]


def build_normalized_adjacency(key, n):
    """Deterministic small synthetic graph: random symmetric adjacency + self-loops,
    symmetrically normalized: D^{-1/2} (A + I) D^{-1/2}."""
    a = (jax.random.uniform(key, (n, n)) < 0.35).astype(jnp.float32)
    a = jnp.maximum(a, a.T)                       # undirected
    a = a * (1.0 - jnp.eye(n)) + jnp.eye(n)       # self-loops
    deg = a.sum(axis=1)
    d_inv_sqrt = 1.0 / jnp.sqrt(deg)
    return a * d_inv_sqrt[:, None] * d_inv_sqrt[None, :]


def glorot(key, shape):
    fan_in, fan_out = shape
    limit = jnp.sqrt(6.0 / (fan_in + fan_out))
    return jax.random.uniform(key, shape, jnp.float32, -limit, limit)


if __name__ == "__main__":
    # Small shapes consistent with the module's forward: N nodes with feature dim
    # in_size -> hid_size -> out_size.
    N, in_size, hid_size, out_size = 8, 32, 16, 8

    root = jax.random.PRNGKey(0)
    k_adj, k_x, k_w1, k_w2 = jax.random.split(root, 4)

    a_hat = build_normalized_adjacency(k_adj, N)                 # [N, N]
    x = jax.random.normal(k_x, (N, in_size), jnp.float32)        # [N, in_size]

    # Deterministic parameter init (GraphConv: weight [in, out], bias [out] = 0)
    w1 = glorot(k_w1, (in_size, hid_size))
    b1 = jnp.zeros((hid_size,), jnp.float32)
    w2 = glorot(k_w2, (hid_size, out_size))
    b2 = jnp.zeros((out_size,), jnp.float32)

    out = gcn_forward(a_hat, x, w1, b1, w2, b2)
    out = jax.block_until_ready(out)

    # Pure-JAX f32 reference; loose tolerance because kernel inputs are bf16
    # (f32 accumulation preserved via preferred_element_type).
    h1_ref = jnp.maximum(a_hat @ (x @ w1) + b1, 0.0)
    h2_ref = a_hat @ (h1_ref @ w2) + b2
    assert out.shape == (N, out_size)
    assert jnp.allclose(out, h2_ref, atol=5e-2, rtol=5e-2)

    print("KERNEL_OK")
</pallas_src>

<mosaic_0001>
module attributes {stable_mosaic.version = 11 : i64} {
  func.func @gcn_kernel(%arg0: memref<128x128xbf16, #tpu.memory_space<vmem>>, %arg1: memref<128x128xbf16, #tpu.memory_space<vmem>>, %arg2: memref<128x128xbf16, #tpu.memory_space<vmem>>, %arg3: memref<1x128xf32, #tpu.memory_space<vmem>>, %arg4: memref<128x128xbf16, #tpu.memory_space<vmem>>, %arg5: memref<1x128xf32, #tpu.memory_space<vmem>>, %arg6: memref<128x128xf32, #tpu.memory_space<vmem>>) attributes {dimension_semantics = [], scalar_prefetch = 0 : i64, scratch_operands = 0 : i64, tpu.core_type = #tpu.core_type<tc>} {
    %c0 = arith.constant 0 : index
    %c0_0 = arith.constant 0 : index
    %0 = vector.load %arg0[%c0, %c0_0] : memref<128x128xbf16, #tpu.memory_space<vmem>>, vector<128x128xbf16>
    %c0_1 = arith.constant 0 : index
    %c0_2 = arith.constant 0 : index
    %1 = vector.load %arg1[%c0_1, %c0_2] : memref<128x128xbf16, #tpu.memory_space<vmem>>, vector<128x128xbf16>
    %c0_3 = arith.constant 0 : index
    %c0_4 = arith.constant 0 : index
    %2 = vector.load %arg2[%c0_3, %c0_4] : memref<128x128xbf16, #tpu.memory_space<vmem>>, vector<128x128xbf16>
    %cst = arith.constant dense<0.000000e+00> : vector<128x128xf32>
    %3 = tpu.matmul %1, %2, %cst {dimension_numbers = #tpu.dot_dimension_numbers<[1], [0], [0], [1], [0, 0, 1, 1], [], []>} : vector<128x128xbf16>, vector<128x128xbf16>, vector<128x128xf32> -> vector<128x128xf32>
    %4 = arith.truncf %3 : vector<128x128xf32> to vector<128x128xbf16>
    %cst_5 = arith.constant dense<0.000000e+00> : vector<128x128xf32>
    %5 = tpu.matmul %0, %4, %cst_5 {dimension_numbers = #tpu.dot_dimension_numbers<[1], [0], [0], [1], [0, 0, 1, 1], [], []>} : vector<128x128xbf16>, vector<128x128xbf16>, vector<128x128xf32> -> vector<128x128xf32>
    %c0_6 = arith.constant 0 : index
    %c0_7 = arith.constant 0 : index
    %6 = vector.load %arg3[%c0_6, %c0_7] : memref<1x128xf32, #tpu.memory_space<vmem>>, vector<1x128xf32>
    %7 = vector.broadcast %6 : vector<1x128xf32> to vector<128x128xf32>
    %8 = arith.addf %5, %7 : vector<128x128xf32>
    %cst_8 = arith.constant 0.000000e+00 : f32
    %9 = vector.broadcast %cst_8 : f32 to vector<128x128xf32>
    %10 = arith.maximumf %8, %9 : vector<128x128xf32>
    %11 = arith.truncf %10 : vector<128x128xf32> to vector<128x128xbf16>
    %c0_9 = arith.constant 0 : index
    %c0_10 = arith.constant 0 : index
    %12 = vector.load %arg4[%c0_9, %c0_10] : memref<128x128xbf16, #tpu.memory_space<vmem>>, vector<128x128xbf16>
    %cst_11 = arith.constant dense<0.000000e+00> : vector<128x128xf32>
    %13 = tpu.matmul %11, %12, %cst_11 {dimension_numbers = #tpu.dot_dimension_numbers<[1], [0], [0], [1], [0, 0, 1, 1], [], []>} : vector<128x128xbf16>, vector<128x128xbf16>, vector<128x128xf32> -> vector<128x128xf32>
    %14 = arith.truncf %13 : vector<128x128xf32> to vector<128x128xbf16>
    %cst_12 = arith.constant dense<0.000000e+00> : vector<128x128xf32>
    %15 = tpu.matmul %0, %14, %cst_12 {dimension_numbers = #tpu.dot_dimension_numbers<[1], [0], [0], [1], [0, 0, 1, 1], [], []>} : vector<128x128xbf16>, vector<128x128xbf16>, vector<128x128xf32> -> vector<128x128xf32>
    %c0_13 = arith.constant 0 : index
    %c0_14 = arith.constant 0 : index
    %16 = vector.load %arg5[%c0_13, %c0_14] : memref<1x128xf32, #tpu.memory_space<vmem>>, vector<1x128xf32>
    %17 = vector.broadcast %16 : vector<1x128xf32> to vector<128x128xf32>
    %18 = arith.addf %15, %17 : vector<128x128xf32>
    %c0_15 = arith.constant 0 : index
    %c0_16 = arith.constant 0 : index
    %19 = vector.load %arg6[%c0_15, %c0_16] : memref<128x128xf32, #tpu.memory_space<vmem>>, vector<128x128xf32>
    tpu.vector_store %arg6[%c0_15, %c0_16], %18 {strides = array<i32>} : memref<128x128xf32, #tpu.memory_space<vmem>>, vector<128x128xf32>,
    return
  }
}

</mosaic_0001>

<llo_original>
// kernel: tpu_custom_call.1
$region0: #{tpu_custom_call.1}
  #allocation0 [shape = 'u32[]', space=smem, size = 0x4, offset = 0x4, fixed_abs, tag = 'smem constant byte address 0x4 - core index']
  #allocation1 [shape = 'u32[144,128]{1,0:T(1,128)}', space=vmem, size = 0x12000, scoped, tag = 'internal scratch']
  %s0 = inlined_call_operand.hbm [shape: bf16[128,128], index: 0, kind: input, shape index: {}]
  %s1 = inlined_call_operand.hbm [shape: bf16[128,128], index: 1, kind: input, shape index: {}]
  %s2 = inlined_call_operand.hbm [shape: bf16[128,128], index: 2, kind: input, shape index: {}]
  %s3 = inlined_call_operand.hbm [shape: f32[1,128], index: 3, kind: input, shape index: {}]
  %s4 = inlined_call_operand.hbm [shape: bf16[128,128], index: 4, kind: input, shape index: {}]
  %s5 = inlined_call_operand.hbm [shape: f32[1,128], index: 5, kind: input, shape index: {}]
  %s6 = inlined_call_operand.hbm [shape: f32[128,128], index: 6, kind: output, shape index: {}]
  %s7 = sld [smem:[#allocation0]]
  $region58: #{tpu_custom_call.1} parent=0
    _
  %s9 = ssub.s32 1, %s7
  %s10 = scalar_select 0, %s9, %s7
  $region1: #{tpu_custom_call.1} parent=0
    #allocation2 [shape = 'u8[32768]{0}', space=vmem, size = 0x8000, scoped, tag = 'input window, operand 0, single buffered']
    #allocation3 [shape = 's32[1]{0}', space=sflag, size = 0x4, scoped, tag = 'scoped memory for tpu_custom_call.1']
    #allocation4 [shape = 's32[1]{0}', space=sflag, size = 0x4, scoped, tag = 'scoped memory for tpu_custom_call.1']
    #allocation5 [shape = 'u8[32768]{0}', space=vmem, size = 0x8000, scoped, tag = 'input window, operand 1, single buffered']
    #allocation6 [shape = 's32[1]{0}', space=sflag, size = 0x4, scoped, tag = 'scoped memory for tpu_custom_call.1']
    #allocation7 [shape = 'u8[32768]{0}', space=vmem, size = 0x8000, scoped, tag = 'input window, operand 2, single buffered']
    #allocation8 [shape = 'u8[512]{0}', space=vmem, size = 0x400, scoped, tag = 'input window, operand 3, single buffered']
    #allocation9 [shape = 's32[1]{0}', space=sflag, size = 0x4, scoped, tag = 'scoped memory for tpu_custom_call.1']
    #allocation10 [shape = 'u8[32768]{0}', space=vmem, size = 0x8000, scoped, tag = 'input window, operand 4, single buffered']
    #allocation11 [shape = 'u8[512]{0}', space=vmem, size = 0x400, scoped, tag = 'input window, operand 5, single buffered']
    #allocation12 [shape = 's32[1]{0}', space=sflag, size = 0x4, scoped, tag = 'scoped memory for tpu_custom_call.1']
    #allocation13 [shape = 'u8[65536]{0}', space=vmem, size = 0x10000, scoped, tag = 'output window, operand 0, single buffered']
    %11 = vsyncpa [#allocation3], 0
    %12 = vsyncpa [#allocation6], 0
    %13 = vsyncpa [#allocation9], 0
    %14 = vsyncpa [#allocation12], 0
    %15 = vsyncpa [#allocation4], 0
    // Predicated region
    $region2: #{tpu_custom_call.1} parent=1 // pred_check
      _
    $region3: #{tpu_custom_call.1} parent=1 // pred_check_branch
      %17 = sbr.rel (0) target = $region5
    $region4: #{tpu_custom_call.1} parent=1 // pred_region
      %s19 = ssub.s32 1024, 1024
      %20 = vsyncadd [#allocation3], %s19
      %s21 = sshll.u32 [#allocation2], 4
      %s22 = int_to_ptr.vmem [resolvable:$true] %s21
      %27 = dma.hbm_to_vmem [thread:$0]  %s0, 1024, %s22, [#allocation3], 64, 64, 4
    $region5: #{tpu_custom_call.1} parent=1 // pred_fallthru
      _
    // Predicated region
    $region6: #{tpu_custom_call.1} parent=1 // pred_check
      _
    $region7: #{tpu_custom_call.1} parent=1 // pred_check_branch
      %29 = sbr.rel (0) target = $region9
    $region8: #{tpu_custom_call.1} parent=1 // pred_region
      %s31 = ssub.s32 1024, 1024
      %32 = vsyncadd [#allocation6], %s31
      %s33 = sshll.u32 [#allocation5], 4
      %s34 = int_to_ptr.vmem [resolvable:$true] %s33
      %39 = dma.hbm_to_vmem [thread:$0]  %s1, 1024, %s34, [#allocation6], 64, 64, 4
    $region9: #{tpu_custom_call.1} parent=1 // pred_fallthru
      _
    // Predicated region
    $region10: #{tpu_custom_call.1} parent=1 // pred_check
      _
    $region11: #{tpu_custom_call.1} parent=1 // pred_check_branch
      %41 = sbr.rel (0) target = $region13
    $region12: #{tpu_custom_call.1} parent=1 // pred_region
      %s43 = ssub.s32 1024, 1024
      %44 = vsyncadd [#allocation6], %s43
      %s45 = sshll.u32 [#allocation7], 4
      %s46 = int_to_ptr.vmem [resolvable:$true] %s45
      %51 = dma.hbm_to_vmem [thread:$0]  %s2, 1024, %s46, [#allocation6], 64, 64, 4
    $region13: #{tpu_custom_call.1} parent=1 // pred_fallthru
      _
    // Predicated region
    $region14: #{tpu_custom_call.1} parent=1 // pred_check
      _
    $region15: #{tpu_custom_call.1} parent=1 // pred_check_branch
      %53 = sbr.rel (0) target = $region17
    $region16: #{tpu_custom_call.1} parent=1 // pred_region
      %s55 = ssub.s32 16, 16
      %56 = vsyncadd [#allocation9], %s55
      %s58 = sshll.u32 [#allocation8], 4
      %s59 = int_to_ptr.vmem [resolvable:$true] %s58
      %61 = dma.hbm_to_vmem [thread:$0]  %s3, 16, %s59, [#allocation9]
    $region17: #{tpu_custom_call.1} parent=1 // pred_fallthru
      _
    // Predicated region
    $region18: #{tpu_custom_call.1} parent=1 // pred_check
      _
    $region19: #{tpu_custom_call.1} parent=1 // pred_check_branch
      %63 = sbr.rel (0) target = $region21
    $region20: #{tpu_custom_call.1} parent=1 // pred_region
      %s65 = ssub.s32 1024, 1024
      %66 = vsyncadd [#allocation9], %s65
      %s67 = sshll.u32 [#allocation10], 4
      %s68 = int_to_ptr.vmem [resolvable:$true] %s67
      %73 = dma.hbm_to_vmem [thread:$0]  %s4, 1024, %s68, [#allocation9], 64, 64, 4
    $region21: #{tpu_custom_call.1} parent=1 // pred_fallthru
      _
    // Predicated region
    $region22: #{tpu_custom_call.1} parent=1 // pred_check
      _
    $region23: #{tpu_custom_call.1} parent=1 // pred_check_branch
      %75 = sbr.rel (0) target = $region25
    $region24: #{tpu_custom_call.1} parent=1 // pred_region
      %s77 = ssub.s32 16, 16
      %78 = vsyncadd [#allocation12], %s77
      %s80 = sshll.u32 [#allocation11], 4
      %s81 = int_to_ptr.vmem [resolvable:$true] %s80
      %83 = dma.hbm_to_vmem [thread:$0]  %s5, 16, %s81, [#allocation12]
    $region25: #{tpu_custom_call.1} parent=1 // pred_fallthru
      _
    // Predicated region
    $region26: #{tpu_custom_call.1} parent=1 // pred_check
      _
    $region27: #{tpu_custom_call.1} parent=1 // pred_check_branch
      %85 = sbr.rel (0) target = $region29
    $region28: #{tpu_custom_call.1} parent=1 // pred_region
      %86 = dma.done [#allocation3], 1024
    $region29: #{tpu_custom_call.1} parent=1 // pred_fallthru
      _
    // Predicated region
    $region30: #{tpu_custom_call.1} parent=1 // pred_check
      _
    $region31: #{tpu_custom_call.1} parent=1 // pred_check_branch
      %88 = sbr.rel (0) target = $region33
    $region32: #{tpu_custom_call.1} parent=1 // pred_region
      %89 = dma.done [#allocation6], 1024
    $region33: #{tpu_custom_call.1} parent=1 // pred_fallthru
      _
    // Predicated region
    $region34: #{tpu_custom_call.1} parent=1 // pred_check
      _
    $region35: #{tpu_custom_call.1} parent=1 // pred_check_branch
      %91 = sbr.rel (0) target = $region37
    $region36: #{tpu_custom_call.1} parent=1 // pred_region
      %92 = dma.done [#allocation6], 1024
    $region37: #{tpu_custom_call.1} parent=1 // pred_fallthru
      _
    // Predicated region
    $region38: #{tpu_custom_call.1} parent=1 // pred_check
      _
    $region39: #{tpu_custom_call.1} parent=1 // pred_check_branch
      %94 = sbr.rel (0) target = $region41
    $region40: #{tpu_custom_call.1} parent=1 // pred_region
      %95 = dma.done [#allocation9], 16
    $region41: #{tpu_custom_call.1} parent=1 // pred_fallthru
      _
    // Predicated region
    $region42: #{tpu_custom_call.1} parent=1 // pred_check
      _
    $region43: #{tpu_custom_call.1} parent=1 // pred_check_branch
      %97 = sbr.rel (0) target = $region45
    $region44: #{tpu_custom_call.1} parent=1 // pred_region
      %98 = dma.done [#allocation9], 1024
    $region45: #{tpu_custom_call.1} parent=1 // pred_fallthru
      _
    // Predicated region
    $region46: #{tpu_custom_call.1} parent=1 // pred_check
      _
    $region47: #{tpu_custom_call.1} parent=1 // pred_check_branch
      %100 = sbr.rel (0) target = $region49
    $region48: #{tpu_custom_call.1} parent=1 // pred_region
      %101 = dma.done [#allocation12], 16
    $region49: #{tpu_custom_call.1} parent=1 // pred_fallthru
      _
    %v103 = vld [vmem:[#allocation2] sm:$0xf]
    %v104 = vld [vmem:[#allocation2 + $0x4] sm:$0xf]
    %v105 = vld [vmem:[#allocation2 + $0x8] sm:$0xf]
    %v106 = vld [vmem:[#allocation2 + $0xc] sm:$0xf]
    %v107 = vld [vmem:[#allocation2 + $0x10] sm:$0xf]
    %v108 = vld [vmem:[#allocation2 + $0x14] sm:$0xf]
    %v109 = vld [vmem:[#allocation2 + $0x18] sm:$0xf]
    %v110 = vld [vmem:[#allocation2 + $0x1c] sm:$0xf]
    %v111 = vld [vmem:[#allocation2 + $0x20] sm:$0xf]
    %v112 = vld [vmem:[#allocation2 + $0x24] sm:$0xf]
    %v113 = vld [vmem:[#allocation2 + $0x28] sm:$0xf]
    %v114 = vld [vmem:[#allocation2 + $0x2c] sm:$0xf]
    %v115 = vld [vmem:[#allocation2 + $0x30] sm:$0xf]
    %v116 = vld [vmem:[#allocation2 + $0x34] sm:$0xf]
    %v117 = vld [vmem:[#allocation2 + $0x38] sm:$0xf]
    %v118 = vld [vmem:[#allocation2 + $0x3c] sm:$0xf]
    %v119 = vld [vmem:[#allocation5] sm:$0xf]
    %v120 = vld [vmem:[#allocation5 + $0x4] sm:$0xf]
    %v121 = vld [vmem:[#allocation5 + $0x8] sm:$0xf]
    %v122 = vld [vmem:[#allocation5 + $0xc] sm:$0xf]
    %v123 = vld [vmem:[#allocation5 + $0x10] sm:$0xf]
    %v124 = vld [vmem:[#allocation5 + $0x14] sm:$0xf]
    %v125 = vld [vmem:[#allocation5 + $0x18] sm:$0xf]
    %v126 = vld [vmem:[#allocation5 + $0x1c] sm:$0xf]
    %v127 = vld [vmem:[#allocation5 + $0x20] sm:$0xf]
    %v128 = vld [vmem:[#allocation5 + $0x24] sm:$0xf]
    %v129 = vld [vmem:[#allocation5 + $0x28] sm:$0xf]
    %v130 = vld [vmem:[#allocation5 + $0x2c] sm:$0xf]
    %v131 = vld [vmem:[#allocation5 + $0x30] sm:$0xf]
    %v132 = vld [vmem:[#allocation5 + $0x34] sm:$0xf]
    %v133 = vld [vmem:[#allocation5 + $0x38] sm:$0xf]
    %v134 = vld [vmem:[#allocation5 + $0x3c] sm:$0xf]
    %v135 = vld [vmem:[#allocation7] sm:$0xf]
    %v136 = vld [vmem:[#allocation7 + $0x4] sm:$0xf]
    %v137 = vld [vmem:[#allocation7 + $0x8] sm:$0xf]
    %v138 = vld [vmem:[#allocation7 + $0xc] sm:$0xf]
    %v139 = vld [vmem:[#allocation7 + $0x10] sm:$0xf]
    %v140 = vld [vmem:[#allocation7 + $0x14] sm:$0xf]
    %v141 = vld [vmem:[#allocation7 + $0x18] sm:$0xf]
    %v142 = vld [vmem:[#allocation7 + $0x1c] sm:$0xf]
    %v143 = vld [vmem:[#allocation7 + $0x20] sm:$0xf]
    %v144 = vld [vmem:[#allocation7 + $0x24] sm:$0xf]
    %v145 = vld [vmem:[#allocation7 + $0x28] sm:$0xf]
    %v146 = vld [vmem:[#allocation7 + $0x2c] sm:$0xf]
    %v147 = vld [vmem:[#allocation7 + $0x30] sm:$0xf]
    %v148 = vld [vmem:[#allocation7 + $0x34] sm:$0xf]
    %v149 = vld [vmem:[#allocation7 + $0x38] sm:$0xf]
    %v150 = vld [vmem:[#allocation7 + $0x3c] sm:$0xf]
    %v167 = vunpack.c.l.b16 %v119
    %v168 = vunpack.c.l.b16 %v120
    %v169 = vunpack.c.l.b16 %v121
    %v170 = vunpack.c.l.b16 %v122
    %v171 = vunpack.c.l.b16 %v123
    %v172 = vunpack.c.l.b16 %v124
    %v173 = vunpack.c.l.b16 %v125
    %v174 = vunpack.c.l.b16 %v126
    %v175 = vunpack.c.l.b16 %v127
    %v176 = vunpack.c.l.b16 %v128
    %v177 = vunpack.c.l.b16 %v129
    %v178 = vunpack.c.l.b16 %v130
    %v179 = vunpack.c.l.b16 %v131
    %v180 = vunpack.c.l.b16 %v132
    %v181 = vunpack.c.l.b16 %v133
    %v182 = vunpack.c.l.b16 %v134
    %v183 = vpack.c.b16 %v168, %v167
    %v184 = vpack.c.b16 %v170, %v169
    %v185 = vpack.c.b16 %v172, %v171
    %v186 = vpack.c.b16 %v174, %v173
    %v187 = vpack.c.b16 %v176, %v175
    %v188 = vpack.c.b16 %v178, %v177
    %v189 = vpack.c.b16 %v180, %v179
    %v190 = vpack.c.b16 %v182, %v181
    %v215 = vunpack.c.l.b16 %v135
    %v216 = vunpack.c.l.b16 %v136
    %v217 = vunpack.c.l.b16 %v137
    %v218 = vunpack.c.l.b16 %v138
    %v219 = vunpack.c.l.b16 %v139
    %v220 = vunpack.c.l.b16 %v140
    %v221 = vunpack.c.l.b16 %v141
    %v222 = vunpack.c.l.b16 %v142
    %v223 = vunpack.c.l.b16 %v143
    %v224 = vunpack.c.l.b16 %v144
    %v225 = vunpack.c.l.b16 %v145
    %v226 = vunpack.c.l.b16 %v146
    %v227 = vunpack.c.l.b16 %v147
    %v228 = vunpack.c.l.b16 %v148
    %v229 = vunpack.c.l.b16 %v149
    %v230 = vunpack.c.l.b16 %v150
    %v231 = vpack.c.b16 %v216, %v215
    %v232 = vpack.c.b16 %v218, %v217
    %v233 = vpack.c.b16 %v220, %v219
    %v234 = vpack.c.b16 %v222, %v221
    %v235 = vpack.c.b16 %v224, %v223
    %v236 = vpack.c.b16 %v226, %v225
    %v237 = vpack.c.b16 %v228, %v227
    %v238 = vpack.c.b16 %v230, %v229
    %247 = vmatprep.subr.bf16.mxu0 0
    %248 = vmatpush1.bf16.msra.mxu0 %v231
    %249 = vmatprep.subr.bf16.mxu0 0
    %250 = vmatpush1.bf16.msra.mxu0 %v232
    %251 = vmatprep.subr.bf16.mxu0 0
    %252 = vmatpush1.bf16.msra.mxu0 %v233
    %253 = vmatprep.subr.bf16.mxu0 0
    %254 = vmatpush1.bf16.msra.mxu0 %v234
    %255 = vmatprep.subr.bf16.mxu0 0
    %256 = vmatpush1.bf16.msra.mxu0 %v235
    %257 = vmatprep.subr.bf16.mxu0 0
    %258 = vmatpush1.bf16.msra.mxu0 %v236
    %259 = vmatprep.subr.bf16.mxu0 0
    %260 = vmatpush1.bf16.msra.mxu0 %v237
    %261 = vmatprep.subr.bf16.mxu0 0
    %262 = vmatpush1.bf16.msra.mxu0 %v238
    %263 = vmatprep.subr.bf16.mxu0 0
    %264 = vmatpush1.bf16.msra.mxu0 0
    %265 = vmatprep.subr.bf16.mxu0 0
    %266 = vmatpush1.bf16.msra.mxu0 0
    %267 = vmatprep.subr.bf16.mxu0 0
    %268 = vmatpush1.bf16.msra.mxu0 0
    %269 = vmatprep.subr.bf16.mxu0 0
    %270 = vmatpush1.bf16.msra.mxu0 0
    %271 = vmatprep.subr.bf16.mxu0 0
    %272 = vmatpush1.bf16.msra.mxu0 0
    %273 = vmatprep.subr.bf16.mxu0 0
    %274 = vmatpush1.bf16.msra.mxu0 0
    %275 = vmatprep.subr.bf16.mxu0 0
    %276 = vmatpush1.bf16.msra.mxu0 0
    %277 = vmatprep.subr.bf16.mxu0 0
    %278 = vmatpush1.bf16.msra.mxu0 0
    %279 = vmatprep.mubr.bf16.mxu0 0
    %280 = vmatmul.mubr.bf16.gmra.mrb[0].mxu0 %v183
    %v281 = vpop.f32.mrb[0].mxu0
    %v282 = vadd.f32 0.0, %v281
    %v283 = vpop.f32.mrb[0].mxu0
    %v284 = vpop.f32.mrb[0].mxu0
    %v285 = vadd.f32 0.0, %v284
    %v286 = vpop.f32.mrb[0].mxu0
    %287 = vmatprep.mubr.bf16.mxu0 0
    %288 = vmatmul.mubr.bf16.gmra.mrb[0].mxu0 %v184
    %v289 = vpop.f32.mrb[0].mxu0
    %v290 = vadd.f32 0.0, %v289
    %v291 = vpop.f32.mrb[0].mxu0
    %v292 = vpop.f32.mrb[0].mxu0
    %v293 = vadd.f32 0.0, %v292
    %v294 = vpop.f32.mrb[0].mxu0
    %295 = vmatprep.mubr.bf16.mxu0 0
    %296 = vmatmul.mubr.bf16.gmra.mrb[0].mxu0 %v185
    %v297 = vpop.f32.mrb[0].mxu0
    %v298 = vadd.f32 0.0, %v297
    %v299 = vpop.f32.mrb[0].mxu0
    %v300 = vpop.f32.mrb[0].mxu0
    %v301 = vadd.f32 0.0, %v300
    %v302 = vpop.f32.mrb[0].mxu0
    %303 = vmatprep.mubr.bf16.mxu0 0
    %304 = vmatmul.mubr.bf16.gmra.mrb[0].mxu0 %v186
    %v305 = vpop.f32.mrb[0].mxu0
    %v306 = vadd.f32 0.0, %v305
    %v307 = vpop.f32.mrb[0].mxu0
    %v308 = vpop.f32.mrb[0].mxu0
    %v309 = vadd.f32 0.0, %v308
    %v310 = vpop.f32.mrb[0].mxu0
    %311 = vmatprep.mubr.bf16.mxu0 0
    %312 = vmatmul.mubr.bf16.gmra.mrb[0].mxu0 %v187
    %v313 = vpop.f32.mrb[0].mxu0
    %v314 = vadd.f32 0.0, %v313
    %v315 = vpop.f32.mrb[0].mxu0
    %v316 = vpop.f32.mrb[0].mxu0
    %v317 = vadd.f32 0.0, %v316
    %v318 = vpop.f32.mrb[0].mxu0
    %319 = vmatprep.mubr.bf16.mxu0 0
    %320 = vmatmul.mubr.bf16.gmra.mrb[0].mxu0 %v188
    %v321 = vpop.f32.mrb[0].mxu0
    %v322 = vadd.f32 0.0, %v321
    %v323 = vpop.f32.mrb[0].mxu0
    %v324 = vpop.f32.mrb[0].mxu0
    %v325 = vadd.f32 0.0, %v324
    %v326 = vpop.f32.mrb[0].mxu0
    %327 = vmatprep.mubr.bf16.mxu0 0
    %328 = vmatmul.mubr.bf16.gmra.mrb[0].mxu0 %v189
    %v329 = vpop.f32.mrb[0].mxu0
    %v330 = vadd.f32 0.0, %v329
    %v331 = vpop.f32.mrb[0].mxu0
    %v332 = vpop.f32.mrb[0].mxu0
    %v333 = vadd.f32 0.0, %v332
    %v334 = vpop.f32.mrb[0].mxu0
    %335 = vmatprep.mubr.bf16.mxu0 0
    %336 = vmatmul.mubr.bf16.gmra.mrb[0].mxu0 %v190
    %v337 = vpop.f32.mrb[0].mxu0
    %v338 = vadd.f32 0.0, %v337
    %v339 = vpop.f32.mrb[0].mxu0
    %v340 = vpop.f32.mrb[0].mxu0
    %v341 = vadd.f32 0.0, %v340
    %v342 = vpop.f32.mrb[0].mxu0
    %343 = vdwg.mxu0
    %v344 = vpack.c.bf16 %v285, %v282
    %v345 = vpack.c.bf16 %v293, %v290
    %v346 = vpack.c.bf16 %v301, %v298
    %v347 = vpack.c.bf16 %v309, %v306
    %v348 = vpack.c.bf16 %v317, %v314
    %v349 = vpack.c.bf16 %v325, %v322
    %v350 = vpack.c.bf16 %v333, %v330
    %v351 = vpack.c.bf16 %v341, %v338
    %v352 = vld [vmem:[#allocation8] sm:$0x1]
    %v354 = vlaneseq
    %v355 = vshrl.u32 %v354, 7
    %v356 = vsub.s32 0, %v355
    %v357 = vrot.slane %v352, %v356
    %v375 = vunpack.c.l.b16 %v103
    %v376 = vunpack.c.l.b16 %v104
    %v377 = vunpack.c.l.b16 %v105
    %v378 = vunpack.c.l.b16 %v106
    %v379 = vunpack.c.l.b16 %v107
    %v380 = vunpack.c.l.b16 %v108
    %v381 = vunpack.c.l.b16 %v109
    %v382 = vunpack.c.l.b16 %v110
    %v383 = vunpack.c.l.b16 %v111
    %v384 = vunpack.c.l.b16 %v112
    %v385 = vunpack.c.l.b16 %v113
    %v386 = vunpack.c.l.b16 %v114
    %v387 = vunpack.c.l.b16 %v115
    %v388 = vunpack.c.l.b16 %v116
    %v389 = vunpack.c.l.b16 %v117
    %v390 = vunpack.c.l.b16 %v118
    %v391 = vpack.c.b16 %v376, %v375
    %v392 = vpack.c.b16 %v378, %v377
    %v393 = vpack.c.b16 %v380, %v379
    %v394 = vpack.c.b16 %v382, %v381
    %v395 = vpack.c.b16 %v384, %v383
    %v396 = vpack.c.b16 %v386, %v385
    %v397 = vpack.c.b16 %v388, %v387
    %v398 = vpack.c.b16 %v390, %v389
    %407 = vmatprep.subr.bf16.mxu0 0
    %408 = vmatpush1.bf16.msra.mxu0 %v344
    %409 = vmatprep.subr.bf16.mxu0 0
    %410 = vmatpush1.bf16.msra.mxu0 %v345
    %411 = vmatprep.subr.bf16.mxu0 0
    %412 = vmatpush1.bf16.msra.mxu0 %v346
    %413 = vmatprep.subr.bf16.mxu0 0
    %414 = vmatpush1.bf16.msra.mxu0 %v347
    %415 = vmatprep.subr.bf16.mxu0 0
    %416 = vmatpush1.bf16.msra.mxu0 %v348
    %417 = vmatprep.subr.bf16.mxu0 0
    %418 = vmatpush1.bf16.msra.mxu0 %v349
    %419 = vmatprep.subr.bf16.mxu0 0
    %420 = vmatpush1.bf16.msra.mxu0 %v350
    %421 = vmatprep.subr.bf16.mxu0 0
    %422 = vmatpush1.bf16.msra.mxu0 %v351
    %423 = vmatprep.subr.bf16.mxu0 0
    %424 = vmatpush1.bf16.msra.mxu0 0
    %425 = vmatprep.subr.bf16.mxu0 0
    %426 = vmatpush1.bf16.msra.mxu0 0
    %427 = vmatprep.subr.bf16.mxu0 0
    %428 = vmatpush1.bf16.msra.mxu0 0
    %429 = vmatprep.subr.bf16.mxu0 0
    %430 = vmatpush1.bf16.msra.mxu0 0
    %431 = vmatprep.subr.bf16.mxu0 0
    %432 = vmatpush1.bf16.msra.mxu0 0
    %433 = vmatprep.subr.bf16.mxu0 0
    %434 = vmatpush1.bf16.msra.mxu0 0
    %435 = vmatprep.subr.bf16.mxu0 0
    %436 = vmatpush1.bf16.msra.mxu0 0
    %437 = vmatprep.subr.bf16.mxu0 0
    %438 = vmatpush1.bf16.msra.mxu0 0
    %439 = vmatprep.mubr.bf16.mxu0 0
    %440 = vmatmul.mubr.bf16.gmra.mrb[0].mxu0 %v391
    %v441 = vpop.f32.mrb[0].mxu0
    %v442 = vadd.f32 %v357, %v441
    %v443 = vpop.f32.mrb[0].mxu0
    %v444 = vpop.f32.mrb[0].mxu0
    %v445 = vadd.f32 %v357, %v444
    %v446 = vpop.f32.mrb[0].mxu0
    %447 = vmatprep.mubr.bf16.mxu0 0
    %448 = vmatmul.mubr.bf16.gmra.mrb[0].mxu0 %v392
    %v449 = vpop.f32.mrb[0].mxu0
    %v450 = vadd.f32 %v357, %v449
    %v451 = vpop.f32.mrb[0].mxu0
    %v452 = vpop.f32.mrb[0].mxu0
    %v453 = vadd.f32 %v357, %v452
    %v454 = vpop.f32.mrb[0].mxu0
    %455 = vmatprep.mubr.bf16.mxu0 0
    %456 = vmatmul.mubr.bf16.gmra.mrb[0].mxu0 %v393
    %v457 = vpop.f32.mrb[0].mxu0
    %v458 = vadd.f32 %v357, %v457
    %v459 = vpop.f32.mrb[0].mxu0
    %v460 = vpop.f32.mrb[0].mxu0
    %v461 = vadd.f32 %v357, %v460
    %v462 = vpop.f32.mrb[0].mxu0
    %463 = vmatprep.mubr.bf16.mxu0 0
    %464 = vmatmul.mubr.bf16.gmra.mrb[0].mxu0 %v394
    %v465 = vpop.f32.mrb[0].mxu0
    %v466 = vadd.f32 %v357, %v465
    %v467 = vpop.f32.mrb[0].mxu0
    %v468 = vpop.f32.mrb[0].mxu0
    %v469 = vadd.f32 %v357, %v468
    %v470 = vpop.f32.mrb[0].mxu0
    %471 = vmatprep.mubr.bf16.mxu0 0
    %472 = vmatmul.mubr.bf16.gmra.mrb[0].mxu0 %v395
    %v473 = vpop.f32.mrb[0].mxu0
    %v474 = vadd.f32 %v357, %v473
    %v475 = vpop.f32.mrb[0].mxu0
    %v476 = vpop.f32.mrb[0].mxu0
    %v477 = vadd.f32 %v357, %v476
    %v478 = vpop.f32.mrb[0].mxu0
    %479 = vmatprep.mubr.bf16.mxu0 0
    %480 = vmatmul.mubr.bf16.gmra.mrb[0].mxu0 %v396
    %v481 = vpop.f32.mrb[0].mxu0
    %v482 = vadd.f32 %v357, %v481
    %v483 = vpop.f32.mrb[0].mxu0
    %v484 = vpop.f32.mrb[0].mxu0
    %v485 = vadd.f32 %v357, %v484
    %v486 = vpop.f32.mrb[0].mxu0
    %487 = vmatprep.mubr.bf16.mxu0 0
    %488 = vmatmul.mubr.bf16.gmra.mrb[0].mxu0 %v397
    %v489 = vpop.f32.mrb[0].mxu0
    %v490 = vadd.f32 %v357, %v489
    %v491 = vpop.f32.mrb[0].mxu0
    %v492 = vpop.f32.mrb[0].mxu0
    %v493 = vadd.f32 %v357, %v492
    %v494 = vpop.f32.mrb[0].mxu0
    %495 = vmatprep.mubr.bf16.mxu0 0
    %496 = vmatmul.mubr.bf16.gmra.mrb[0].mxu0 %v398
    %v497 = vpop.f32.mrb[0].mxu0
    %v498 = vadd.f32 %v357, %v497
    %v499 = vpop.f32.mrb[0].mxu0
    %v500 = vpop.f32.mrb[0].mxu0
    %v501 = vadd.f32 %v357, %v500
    %v502 = vpop.f32.mrb[0].mxu0
    %503 = vdwg.mxu0
    %v504 = vmax.f32 %v442, 0.0
    %v505 = vmax.f32 %v445, 0.0
    %v506 = vmax.f32 %v450, 0.0
    %v507 = vmax.f32 %v453, 0.0
    %v508 = vmax.f32 %v458, 0.0
    %v509 = vmax.f32 %v461, 0.0
    %v510 = vmax.f32 %v466, 0.0
    %v511 = vmax.f32 %v469, 0.0
    %v512 = vmax.f32 %v474, 0.0
    %v513 = vmax.f32 %v477, 0.0
    %v514 = vmax.f32 %v482, 0.0
    %v515 = vmax.f32 %v485, 0.0
    %v516 = vmax.f32 %v490, 0.0
    %v517 = vmax.f32 %v493, 0.0
    %v518 = vmax.f32 %v498, 0.0
    %v519 = vmax.f32 %v501, 0.0
    %v520 = vpack.c.bf16 %v505, %v504
    %v521 = vpack.c.bf16 %v507, %v506
    %v522 = vpack.c.bf16 %v509, %v508
    %v523 = vpack.c.bf16 %v511, %v510
    %v524 = vpack.c.bf16 %v513, %v512
    %v525 = vpack.c.bf16 %v515, %v514
    %v526 = vpack.c.bf16 %v517, %v516
    %v527 = vpack.c.bf16 %v519, %v518
    %v528 = vld [vmem:[#allocation10] sm:$0xf]
    %v529 = vld [vmem:[#allocation10 + $0x4] sm:$0xf]
    %v530 = vld [vmem:[#allocation10 + $0x8] sm:$0xf]
    %v531 = vld [vmem:[#allocation10 + $0xc] sm:$0xf]
    %v532 = vld [vmem:[#allocation10 + $0x10] sm:$0xf]
    %v533 = vld [vmem:[#allocation10 + $0x14] sm:$0xf]
    %v534 = vld [vmem:[#allocation10 + $0x18] sm:$0xf]
    %v535 = vld [vmem:[#allocation10 + $0x1c] sm:$0xf]
    %v536 = vld [vmem:[#allocation10 + $0x20] sm:$0xf]
    %v537 = vld [vmem:[#allocation10 + $0x24] sm:$0xf]
    %v538 = vld [vmem:[#allocation10 + $0x28] sm:$0xf]
    %v539 = vld [vmem:[#allocation10 + $0x2c] sm:$0xf]
    %v540 = vld [vmem:[#allocation10 + $0x30] sm:$0xf]
    %v541 = vld [vmem:[#allocation10 + $0x34] sm:$0xf]
    %v542 = vld [vmem:[#allocation10 + $0x38] sm:$0xf]
    %v543 = vld [vmem:[#allocation10 + $0x3c] sm:$0xf]
    %v560 = vunpack.c.l.b16 %v528
    %v561 = vunpack.c.l.b16 %v529
    %v562 = vunpack.c.l.b16 %v530
    %v563 = vunpack.c.l.b16 %v531
    %v564 = vunpack.c.l.b16 %v532
    %v565 = vunpack.c.l.b16 %v533
    %v566 = vunpack.c.l.b16 %v534
    %v567 = vunpack.c.l.b16 %v535
    %v568 = vunpack.c.l.b16 %v536
    %v569 = vunpack.c.l.b16 %v537
    %v570 = vunpack.c.l.b16 %v538
    %v571 = vunpack.c.l.b16 %v539
    %v572 = vunpack.c.l.b16 %v540
    %v573 = vunpack.c.l.b16 %v541
    %v574 = vunpack.c.l.b16 %v542
    %v575 = vunpack.c.l.b16 %v543
    %v576 = vpack.c.b16 %v561, %v560
    %v577 = vpack.c.b16 %v563, %v562
    %v578 = vpack.c.b16 %v565, %v564
    %v579 = vpack.c.b16 %v567, %v566
    %v580 = vpack.c.b16 %v569, %v568
    %v581 = vpack.c.b16 %v571, %v570
    %v582 = vpack.c.b16 %v573, %v572
    %v583 = vpack.c.b16 %v575, %v574
    %592 = vmatprep.subr.bf16.mxu0 0
    %593 = vmatpush1.bf16.msra.mxu0 %v576
    %594 = vmatprep.subr.bf16.mxu0 0
    %595 = vmatpush1.bf16.msra.mxu0 %v577
    %596 = vmatprep.subr.bf16.mxu0 0
    %597 = vmatpush1.bf16.msra.mxu0 %v578
    %598 = vmatprep.subr.bf16.mxu0 0
    %599 = vmatpush1.bf16.msra.mxu0 %v579
    %600 = vmatprep.subr.bf16.mxu0 0
    %601 = vmatpush1.bf16.msra.mxu0 %v580
    %602 = vmatprep.subr.bf16.mxu0 0
    %603 = vmatpush1.bf16.msra.mxu0 %v581
    %604 = vmatprep.subr.bf16.mxu0 0
    %605 = vmatpush1.bf16.msra.mxu0 %v582
    %606 = vmatprep.subr.bf16.mxu0 0
    %607 = vmatpush1.bf16.msra.mxu0 %v583
    %608 = vmatprep.subr.bf16.mxu0 0
    %609 = vmatpush1.bf16.msra.mxu0 0
    %610 = vmatprep.subr.bf16.mxu0 0
    %611 = vmatpush1.bf16.msra.mxu0 0
    %612 = vmatprep.subr.bf16.mxu0 0
    %613 = vmatpush1.bf16.msra.mxu0 0
    %614 = vmatprep.subr.bf16.mxu0 0
    %615 = vmatpush1.bf16.msra.mxu0 0
    %616 = vmatprep.subr.bf16.mxu0 0
    %617 = vmatpush1.bf16.msra.mxu0 0
    %618 = vmatprep.subr.bf16.mxu0 0
    %619 = vmatpush1.bf16.msra.mxu0 0
    %620 = vmatprep.subr.bf16.mxu0 0
    %621 = vmatpush1.bf16.msra.mxu0 0
    %622 = vmatprep.subr.bf16.mxu0 0
    %623 = vmatpush1.bf16.msra.mxu0 0
    %624 = vmatprep.mubr.bf16.mxu0 0
    %625 = vmatmul.mubr.bf16.gmra.mrb[0].mxu0 %v520
    %v626 = vpop.f32.mrb[0].mxu0
    %v627 = vadd.f32 0.0, %v626
    %v628 = vpop.f32.mrb[0].mxu0
    %v629 = vpop.f32.mrb[0].mxu0
    %v630 = vadd.f32 0.0, %v629
    %v631 = vpop.f32.mrb[0].mxu0
    %632 = vmatprep.mubr.bf16.mxu0 0
    %633 = vmatmul.mubr.bf16.gmra.mrb[0].mxu0 %v521
    %v634 = vpop.f32.mrb[0].mxu0
    %v635 = vadd.f32 0.0, %v634
    %v636 = vpop.f32.mrb[0].mxu0
    %v637 = vpop.f32.mrb[0].mxu0
    %v638 = vadd.f32 0.0, %v637
    %v639 = vpop.f32.mrb[0].mxu0
    %640 = vmatprep.mubr.bf16.mxu0 0
    %641 = vmatmul.mubr.bf16.gmra.mrb[0].mxu0 %v522
    %v642 = vpop.f32.mrb[0].mxu0
    %v643 = vadd.f32 0.0, %v642
    %v644 = vpop.f32.mrb[0].mxu0
    %v645 = vpop.f32.mrb[0].mxu0
    %v646 = vadd.f32 0.0, %v645
    %v647 = vpop.f32.mrb[0].mxu0
    %648 = vmatprep.mubr.bf16.mxu0 0
    %649 = vmatmul.mubr.bf16.gmra.mrb[0].mxu0 %v523
    %v650 = vpop.f32.mrb[0].mxu0
    %v651 = vadd.f32 0.0, %v650
    %v652 = vpop.f32.mrb[0].mxu0
    %v653 = vpop.f32.mrb[0].mxu0
    %v654 = vadd.f32 0.0, %v653
    %v655 = vpop.f32.mrb[0].mxu0
    %656 = vmatprep.mubr.bf16.mxu0 0
    %657 = vmatmul.mubr.bf16.gmra.mrb[0].mxu0 %v524
    %v658 = vpop.f32.mrb[0].mxu0
    %v659 = vadd.f32 0.0, %v658
    %v660 = vpop.f32.mrb[0].mxu0
    %v661 = vpop.f32.mrb[0].mxu0
    %v662 = vadd.f32 0.0, %v661
    %v663 = vpop.f32.mrb[0].mxu0
    %664 = vmatprep.mubr.bf16.mxu0 0
    %665 = vmatmul.mubr.bf16.gmra.mrb[0].mxu0 %v525
    %v666 = vpop.f32.mrb[0].mxu0
    %v667 = vadd.f32 0.0, %v666
    %v668 = vpop.f32.mrb[0].mxu0
    %v669 = vpop.f32.mrb[0].mxu0
    %v670 = vadd.f32 0.0, %v669
    %v671 = vpop.f32.mrb[0].mxu0
    %672 = vmatprep.mubr.bf16.mxu0 0
    %673 = vmatmul.mubr.bf16.gmra.mrb[0].mxu0 %v526
    %v674 = vpop.f32.mrb[0].mxu0
    %v675 = vadd.f32 0.0, %v674
    %v676 = vpop.f32.mrb[0].mxu0
    %v677 = vpop.f32.mrb[0].mxu0
    %v678 = vadd.f32 0.0, %v677
    %v679 = vpop.f32.mrb[0].mxu0
    %680 = vmatprep.mubr.bf16.mxu0 0
    %681 = vmatmul.mubr.bf16.gmra.mrb[0].mxu0 %v527
    %v682 = vpop.f32.mrb[0].mxu0
    %v683 = vadd.f32 0.0, %v682
    %v684 = vpop.f32.mrb[0].mxu0
    %v685 = vpop.f32.mrb[0].mxu0
    %v686 = vadd.f32 0.0, %v685
    %v687 = vpop.f32.mrb[0].mxu0
    %688 = vdwg.mxu0
    %v689 = vpack.c.bf16 %v630, %v627
    %v690 = vpack.c.bf16 %v638, %v635
    %v691 = vpack.c.bf16 %v646, %v643
    %v692 = vpack.c.bf16 %v654, %v651
    %v693 = vpack.c.bf16 %v662, %v659
    %v694 = vpack.c.bf16 %v670, %v667
    %v695 = vpack.c.bf16 %v678, %v675
    %v696 = vpack.c.bf16 %v686, %v683
    %v697 = vld [vmem:[#allocation11] sm:$0x1]
    %v699 = vlaneseq
    %v700 = vshrl.u32 %v699, 7
    %v701 = vsub.s32 0, %v700
    %v702 = vrot.slane %v697, %v701
    %704 = vmatprep.subr.bf16.mxu0 0
    %705 = vmatpush1.bf16.msra.mxu0 %v689
    %706 = vmatprep.subr.bf16.mxu0 0
    %707 = vmatpush1.bf16.msra.mxu0 %v690
    %708 = vmatprep.subr.bf16.mxu0 0
    %709 = vmatpush1.bf16.msra.mxu0 %v691
    %710 = vmatprep.subr.bf16.mxu0 0
    %711 = vmatpush1.bf16.msra.mxu0 %v692
    %712 = vmatprep.subr.bf16.mxu0 0
    %713 = vmatpush1.bf16.msra.mxu0 %v693
    %714 = vmatprep.subr.bf16.mxu0 0
    %715 = vmatpush1.bf16.msra.mxu0 %v694
    %716 = vmatprep.subr.bf16.mxu0 0
    %717 = vmatpush1.bf16.msra.mxu0 %v695
    %718 = vmatprep.subr.bf16.mxu0 0
    %719 = vmatpush1.bf16.msra.mxu0 %v696
    %720 = vmatprep.subr.bf16.mxu0 0
    %721 = vmatpush1.bf16.msra.mxu0 0
    %722 = vmatprep.subr.bf16.mxu0 0
    %723 = vmatpush1.bf16.msra.mxu0 0
    %724 = vmatprep.subr.bf16.mxu0 0
    %725 = vmatpush1.bf16.msra.mxu0 0
    %726 = vmatprep.subr.bf16.mxu0 0
    %727 = vmatpush1.bf16.msra.mxu0 0
    %728 = vmatprep.subr.bf16.mxu0 0
    %729 = vmatpush1.bf16.msra.mxu0 0
    %730 = vmatprep.subr.bf16.mxu0 0
    %731 = vmatpush1.bf16.msra.mxu0 0
    %732 = vmatprep.subr.bf16.mxu0 0
    %733 = vmatpush1.bf16.msra.mxu0 0
    %734 = vmatprep.subr.bf16.mxu0 0
    %735 = vmatpush1.bf16.msra.mxu0 0
    %736 = vmatprep.mubr.bf16.mxu0 0
    %737 = vmatmul.mubr.bf16.gmra.mrb[0].mxu0 %v391
    %v738 = vpop.f32.mrb[0].mxu0
    %v739 = vadd.f32 %v702, %v738
    %v740 = vpop.f32.mrb[0].mxu0
    %v741 = vpop.f32.mrb[0].mxu0
    %v742 = vadd.f32 %v702, %v741
    %v743 = vpop.f32.mrb[0].mxu0
    %744 = vmatprep.mubr.bf16.mxu0 0
    %745 = vmatmul.mubr.bf16.gmra.mrb[0].mxu0 %v392
    %v746 = vpop.f32.mrb[0].mxu0
    %v747 = vadd.f32 %v702, %v746
    %v748 = vpop.f32.mrb[0].mxu0
    %v749 = vpop.f32.mrb[0].mxu0
    %v750 = vadd.f32 %v702, %v749
    %v751 = vpop.f32.mrb[0].mxu0
    %752 = vmatprep.mubr.bf16.mxu0 0
    %753 = vmatmul.mubr.bf16.gmra.mrb[0].mxu0 %v393
    %v754 = vpop.f32.mrb[0].mxu0
    %v755 = vadd.f32 %v702, %v754
    %v756 = vpop.f32.mrb[0].mxu0
    %v757 = vpop.f32.mrb[0].mxu0
    %v758 = vadd.f32 %v702, %v757
    %v759 = vpop.f32.mrb[0].mxu0
    %760 = vmatprep.mubr.bf16.mxu0 0
    %761 = vmatmul.mubr.bf16.gmra.mrb[0].mxu0 %v394
    %v762 = vpop.f32.mrb[0].mxu0
    %v763 = vadd.f32 %v702, %v762
    %v764 = vpop.f32.mrb[0].mxu0
    %v765 = vpop.f32.mrb[0].mxu0
    %v766 = vadd.f32 %v702, %v765
    %v767 = vpop.f32.mrb[0].mxu0
    %768 = vmatprep.mubr.bf16.mxu0 0
    %769 = vmatmul.mubr.bf16.gmra.mrb[0].mxu0 %v395
    %v770 = vpop.f32.mrb[0].mxu0
    %v771 = vadd.f32 %v702, %v770
    %v772 = vpop.f32.mrb[0].mxu0
    %v773 = vpop.f32.mrb[0].mxu0
    %v774 = vadd.f32 %v702, %v773
    %v775 = vpop.f32.mrb[0].mxu0
    %776 = vmatprep.mubr.bf16.mxu0 0
    %777 = vmatmul.mubr.bf16.gmra.mrb[0].mxu0 %v396
    %v778 = vpop.f32.mrb[0].mxu0
    %v779 = vadd.f32 %v702, %v778
    %v780 = vpop.f32.mrb[0].mxu0
    %v781 = vpop.f32.mrb[0].mxu0
    %v782 = vadd.f32 %v702, %v781
    %v783 = vpop.f32.mrb[0].mxu0
    %784 = vmatprep.mubr.bf16.mxu0 0
    %785 = vmatmul.mubr.bf16.gmra.mrb[0].mxu0 %v397
    %v786 = vpop.f32.mrb[0].mxu0
    %v787 = vadd.f32 %v702, %v786
    %v788 = vpop.f32.mrb[0].mxu0
    %v789 = vpop.f32.mrb[0].mxu0
    %v790 = vadd.f32 %v702, %v789
    %v791 = vpop.f32.mrb[0].mxu0
    %792 = vmatprep.mubr.bf16.mxu0 0
    %793 = vmatmul.mubr.bf16.gmra.mrb[0].mxu0 %v398
    %v794 = vpop.f32.mrb[0].mxu0
    %v795 = vadd.f32 %v702, %v794
    %v796 = vpop.f32.mrb[0].mxu0
    %v797 = vpop.f32.mrb[0].mxu0
    %v798 = vadd.f32 %v702, %v797
    %v799 = vpop.f32.mrb[0].mxu0
    %800 = vdwg.mxu0
    %801 = vst [vmem:[#allocation13] sm:$0xff] %v739
    %802 = vst [vmem:[#allocation13 + $0x8] sm:$0xff] %v742
    %803 = vst [vmem:[#allocation13 + $0x10] sm:$0xff] %v747
    %804 = vst [vmem:[#allocation13 + $0x18] sm:$0xff] %v750
    %805 = vst [vmem:[#allocation13 + $0x20] sm:$0xff] %v755
    %806 = vst [vmem:[#allocation13 + $0x28] sm:$0xff] %v758
    %807 = vst [vmem:[#allocation13 + $0x30] sm:$0xff] %v763
    %808 = vst [vmem:[#allocation13 + $0x38] sm:$0xff] %v766
    %809 = vst [vmem:[#allocation13 + $0x40] sm:$0xff] %v771
    %810 = vst [vmem:[#allocation13 + $0x48] sm:$0xff] %v774
    %811 = vst [vmem:[#allocation13 + $0x50] sm:$0xff] %v779
    %812 = vst [vmem:[#allocation13 + $0x58] sm:$0xff] %v782
    %813 = vst [vmem:[#allocation13 + $0x60] sm:$0xff] %v787
    %814 = vst [vmem:[#allocation13 + $0x68] sm:$0xff] %v790
    %815 = vst [vmem:[#allocation13 + $0x70] sm:$0xff] %v795
    %816 = vst [vmem:[#allocation13 + $0x78] sm:$0xff] %v798
    // Predicated region
    $region50: #{tpu_custom_call.1} parent=1 // pred_check
      _
    $region51: #{tpu_custom_call.1} parent=1 // pred_check_branch
      %818 = sbr.rel (0) target = $region53
    $region52: #{tpu_custom_call.1} parent=1 // pred_region
      %s820 = ssub.s32 2048, 2048
      %821 = vsyncadd [#allocation4], %s820
      %s822 = sshll.u32 [#allocation13], 4
      %s823 = int_to_ptr.vmem [resolvable:$true] %s822
      %828 = dma.vmem_to_hbm [thread:$0]  %s823, 2048, %s6, [#allocation4], 128, 128, 8
    $region53: #{tpu_custom_call.1} parent=1 // pred_fallthru
      _
    // Predicated region
    $region54: #{tpu_custom_call.1} parent=1 // pred_check
      _
    $region55: #{tpu_custom_call.1} parent=1 // pred_check_branch
      %830 = sbr.rel (0) target = $region57
    $region56: #{tpu_custom_call.1} parent=1 // pred_region
      %831 = dma.done [#allocation4], 2048
    $region57: #{tpu_custom_call.1} parent=1 // pred_fallthru
      _
    %832 = vsyncpa [#allocation3], 1
    %833 = vsyncpa [#allocation6], 1
    %834 = vsyncpa [#allocation9], 1
    %835 = vsyncpa [#allocation12], 1
    %836 = vsyncpa [#allocation4], 1

</llo_original>
